<compile_context>
chip_gen: v7x
topology: tpu7x:2x2x1
jax: 0.10.0
libtpu: 0.0.40
codegen_flags: <defaults>
</compile_context>

<pallas_src>
import jax
import jax.numpy as jnp
from jax.experimental import pallas as pl
from jax.experimental.pallas import tpu as pltpu


# --------------------------------------------------------------------------- #
# Kernels
# --------------------------------------------------------------------------- #
def _spp_nchw_kernel(x_ref, o_ref, ph_ref, pw_ref, cur_ref):
    # x_ref  : (1, BC, H, W)  input block (one batch elem, BC channels)
    # o_ref  : (1, BC, H, W)  one branch of the concat (channel slice of 4C out)
    # ph_ref : (BC, H+4, W)   -inf padded scratch for the H pass
    # pw_ref : (BC, H, W+4)   -inf padded scratch for the W pass
    # cur_ref: (BC, H, W)     cascade carry across the branch grid axis
    b = pl.program_id(2)
    BC, H, W = cur_ref.shape
    dt = x_ref.dtype
    neg = jnp.asarray(-jnp.inf, dt)

    @pl.when(b == 0)
    def _():
        cur_ref[...] = x_ref[0]
        # -inf borders written once per (n, cb) block; interiors are fully
        # overwritten by every pool below (no full-buffer clears).
        ph_ref[:, 0:2, :] = jnp.full((BC, 2, W), neg, dt)
        ph_ref[:, H + 2:H + 4, :] = jnp.full((BC, 2, W), neg, dt)
        pw_ref[:, :, 0:2] = jnp.full((BC, H, 2), neg, dt)
        pw_ref[:, :, W + 2:W + 4] = jnp.full((BC, H, 2), neg, dt)

    @pl.when(b > 0)
    def _():
        # One 5x5 stride-1 "same" (-inf padded) max pool of the cascade carry.
        # Separable: 5-tap max along H, then along W; tree-reduced maxima.
        ph_ref[:, 2:H + 2, :] = cur_ref[...]
        t01 = jnp.maximum(ph_ref[:, 0:H, :], ph_ref[:, 1:H + 1, :])
        t23 = jnp.maximum(ph_ref[:, 2:H + 2, :], ph_ref[:, 3:H + 3, :])
        t = jnp.maximum(jnp.maximum(t01, t23), ph_ref[:, 4:H + 4, :])
        pw_ref[:, :, 2:W + 2] = t
        w01 = jnp.maximum(pw_ref[:, :, 0:W], pw_ref[:, :, 1:W + 1])
        w23 = jnp.maximum(pw_ref[:, :, 2:W + 2], pw_ref[:, :, 3:W + 3])
        cur_ref[...] = jnp.maximum(jnp.maximum(w01, w23), pw_ref[:, :, 4:W + 4])

    # branch b writes channels [b*C + cb*BC, b*C + (cb+1)*BC) of the 4C output
    o_ref[0] = cur_ref[...]


def _spp_nhwc_kernel(x_ref, o_ref, ph_ref, pw_ref, cur_ref):
    # Lane-dense channels-last variant: channels on the lane (last) axis.
    # x_ref  : (1, H, W, CB)
    # o_ref  : (1, 1, H, W, CB)   branch b of the (N, 4, H, W, C) output
    # ph_ref : (H+4, W, CB)       -inf padded scratch for the H pass
    # pw_ref : (H, W+4, CB)       -inf padded scratch for the W pass (sublane)
    # cur_ref: (H, W, CB)         cascade carry
    b = pl.program_id(2)
    H, W, CB = cur_ref.shape
    dt = x_ref.dtype
    neg = jnp.asarray(-jnp.inf, dt)

    @pl.when(b == 0)
    def _():
        cur_ref[...] = x_ref[0]
        ph_ref[0:2] = jnp.full((2, W, CB), neg, dt)
        ph_ref[H + 2:H + 4] = jnp.full((2, W, CB), neg, dt)
        pw_ref[:, 0:2, :] = jnp.full((H, 2, CB), neg, dt)
        pw_ref[:, W + 2:W + 4, :] = jnp.full((H, 2, CB), neg, dt)

    @pl.when(b > 0)
    def _():
        ph_ref[2:H + 2] = cur_ref[...]
        t01 = jnp.maximum(ph_ref[0:H], ph_ref[1:H + 1])
        t23 = jnp.maximum(ph_ref[2:H + 2], ph_ref[3:H + 3])
        t = jnp.maximum(jnp.maximum(t01, t23), ph_ref[4:H + 4])
        pw_ref[:, 2:W + 2, :] = t
        w01 = jnp.maximum(pw_ref[:, 0:W, :], pw_ref[:, 1:W + 1, :])
        w23 = jnp.maximum(pw_ref[:, 2:W + 2, :], pw_ref[:, 3:W + 3, :])
        cur_ref[...] = jnp.maximum(jnp.maximum(w01, w23), pw_ref[:, 4:W + 4, :])

    o_ref[0, 0] = cur_ref[...]


# --------------------------------------------------------------------------- #
# Block sizing (padding-aware VMEM math, generation-aware budget)
# --------------------------------------------------------------------------- #
def _round_up(x, m):
    return (x + m - 1) // m * m


def _sublane(dtype):
    # rows per sublane group: 8 for 32-bit, 16 for bf16, 32 for int8
    return 8 * max(1, 4 // jnp.dtype(dtype).itemsize)


def _vmem_caps():
    """(block-picking budget, requested scoped VMEM limit) in bytes."""
    try:
        phys = int(pltpu.get_tpu_info().vmem_capacity_bytes)
    except Exception:
        phys = 64 << 20  # conservative: v7x per-core VMEM
    budget = min(phys // 2, 96 << 20)        # working-set target for blocks
    limit = min(phys - (8 << 20), 100 << 20)  # raise above 16/32 MiB defaults
    return budget, limit


def _pick_block_c_nchw(N, C, H, W, dtype, budget):
    it = jnp.dtype(dtype).itemsize
    sub = _sublane(dtype)
    Wp, W4p = _round_up(W, 128), _round_up(W + 4, 128)
    Hp, H4p = _round_up(H, sub), _round_up(H + 4, sub)
    per_c = it * (2 * Hp * Wp       # input block, double-buffered
                  + 2 * Hp * Wp     # output block (per-branch), double-buffered
                  + H4p * Wp        # ph scratch
                  + Hp * W4p        # pw scratch
                  + Hp * Wp)        # cascade carry
    divs = [d for d in range(1, C + 1) if C % d == 0]
    fitting = [d for d in divs if d * per_c <= budget] or [1]
    bc = max(fitting)
    # keep >= 2 parallel grid steps when possible (v7x has 2 TensorCores)
    while N * (C // bc) < 2:
        smaller = [d for d in fitting if d < bc]
        if not smaller:
            break
        bc = max(smaller)
    return bc


def _pick_block_c_nhwc(N, C, H, W, dtype, budget):
    it = jnp.dtype(dtype).itemsize
    sub = _sublane(dtype)
    Wp, W4p = _round_up(W, sub), _round_up(W + 4, sub)

    def foot(cb):
        cbp = _round_up(cb, 128)
        return it * cbp * (2 * H * Wp + 2 * H * Wp + (H + 4) * Wp
                           + H * W4p + H * Wp)

    cands = [d for d in range(128, C + 1, 128) if C % d == 0]
    fitting = [d for d in cands if foot(d) <= budget] or [cands[0]]
    cb = max(fitting)
    while N * (C // cb) < 2:
        smaller = [d for d in fitting if d < cb]
        if not smaller:
            break
        cb = max(smaller)
    return cb


# --------------------------------------------------------------------------- #
# Wrappers
# --------------------------------------------------------------------------- #
def _spp_nchw(x, block_c, budget, vmem_limit):
    N, C, H, W = x.shape
    dt = x.dtype
    bc = block_c if block_c is not None else _pick_block_c_nchw(N, C, H, W, dt, budget)
    assert C % bc == 0
    n_cb = C // bc
    return pl.pallas_call(
        _spp_nchw_kernel,
        out_shape=jax.ShapeDtypeStruct((N, 4 * C, H, W), dt),
        grid_spec=pltpu.PrefetchScalarGridSpec(
            num_scalar_prefetch=0,
            grid=(N, n_cb, 4),                     # (batch, channel blocks, branch)
            in_specs=[
                pl.BlockSpec((1, bc, H, W), lambda n, cb, b: (n, cb, 0, 0)),
            ],
            # branch b of channel-block cb lands at 4C-channel block b*n_cb+cb,
            # i.e. the output is emitted directly in the cat([x,y1,y2,y3]) layout.
            out_specs=pl.BlockSpec((1, bc, H, W),
                                   lambda n, cb, b: (n, b * n_cb + cb, 0, 0)),
            scratch_shapes=[
                pltpu.VMEM((bc, H + 4, W), dt),
                pltpu.VMEM((bc, H, W + 4), dt),
                pltpu.VMEM((bc, H, W), dt),
            ],
        ),
        compiler_params=pltpu.CompilerParams(
            dimension_semantics=("parallel", "parallel", "arbitrary"),
            vmem_limit_bytes=int(vmem_limit)),
    )(x)


def _spp_nhwc(x, block_c, budget, vmem_limit):
    N, C, H, W = x.shape
    dt = x.dtype
    cb = block_c if block_c is not None else _pick_block_c_nhwc(N, C, H, W, dt, budget)
    assert C % cb == 0 and cb % 128 == 0
    n_cb = C // cb
    xt = jnp.transpose(x, (0, 2, 3, 1))            # (N, H, W, C): lane-dense on C
    out5 = pl.pallas_call(
        _spp_nhwc_kernel,
        out_shape=jax.ShapeDtypeStruct((N, 4, H, W, C), dt),
        grid_spec=pltpu.PrefetchScalarGridSpec(
            num_scalar_prefetch=0,
            grid=(N, n_cb, 4),
            in_specs=[
                pl.BlockSpec((1, H, W, cb), lambda n, c, b: (n, 0, 0, c)),
            ],
            out_specs=pl.BlockSpec((1, 1, H, W, cb),
                                   lambda n, c, b: (n, b, 0, 0, c)),
            scratch_shapes=[
                pltpu.VMEM((H + 4, W, cb), dt),
                pltpu.VMEM((H, W + 4, cb), dt),
                pltpu.VMEM((H, W, cb), dt),
            ],
        ),
        compiler_params=pltpu.CompilerParams(
            dimension_semantics=("parallel", "parallel", "arbitrary"),
            vmem_limit_bytes=int(vmem_limit)),
    )(xt)
    # Back to the PyTorch NCHW concat layout (a channels-last consumer would
    # take `out5` directly and skip this boundary transpose).
    return jnp.transpose(out5, (0, 1, 4, 2, 3)).reshape(N, 4 * C, H, W)


def pure_spp_pallas(x, *, block_c=None):
    """pureSPP forward: x (N, C, H, W) -> (N, 4C, H, W) = cat([x, p5, p9, p13], 1)."""
    if not jnp.issubdtype(x.dtype, jnp.floating):
        raise TypeError("pure_spp_pallas supports floating dtypes only "
                        "(-inf max-pool padding, matching nn.MaxPool2d).")
    N, C, H, W = x.shape
    budget, vmem_limit = _vmem_caps()
    # TODO(synk): for very large H*W a spatial (halo) blocking would be needed;
    # SPP sites in DPCSANet have H,W ~ 13-20 so channel blocking suffices.
    if C % 128 == 0:
        return _spp_nhwc(x, block_c, budget, vmem_limit)   # lane-dense headline path
    return _spp_nchw(x, block_c, budget, vmem_limit)       # small-C fallback


# --------------------------------------------------------------------------- #
# Reference & self-check
# --------------------------------------------------------------------------- #
def _maxpool_same_ref(x, k):
    p = k // 2
    return jax.lax.reduce_window(
        x, -jnp.inf, jax.lax.max,
        window_dimensions=(1, 1, k, k), window_strides=(1, 1, 1, 1),
        padding=((0, 0), (0, 0), (p, p), (p, p)))


def pure_spp_reference(x):
    return jnp.concatenate(
        [x, _maxpool_same_ref(x, 5), _maxpool_same_ref(x, 9),
         _maxpool_same_ref(x, 13)], axis=1)


if __name__ == "__main__":
    k1, k2 = jax.random.split(jax.random.PRNGKey(0))

    # Small-C path (NCHW kernel, direct (N,4C,H,W) emission).
    x1 = jax.random.normal(k1, (2, 4, 16, 16), jnp.float32)
    out1 = jax.block_until_ready(pure_spp_pallas(x1))
    ref1 = pure_spp_reference(x1)
    assert out1.shape == (2, 16, 16, 16)
    assert jnp.max(jnp.abs(out1 - ref1)) < 1e-6, "NCHW path mismatch vs reference"

    # Lane-dense channels-last path (realistic SPP-site shape, kept small).
    x2 = jax.random.normal(k2, (1, 256, 13, 13), jnp.float32)
    out2 = jax.block_until_ready(pure_spp_pallas(x2))
    ref2 = pure_spp_reference(x2)
    assert out2.shape == (1, 1024, 13, 13)
    assert jnp.max(jnp.abs(out2 - ref2)) < 1e-6, "NHWC path mismatch vs reference"

    print("KERNEL_OK")
</pallas_src>

<mosaic_0001>
module attributes {stable_mosaic.version = 11 : i64} {
  func.func @_spp_nchw_kernel(%arg0: i32, %arg1: i32, %arg2: i32, %arg3: memref<1x4x16x16xf32, #tpu.memory_space<vmem>>, %arg4: memref<1x4x16x16xf32, #tpu.memory_space<vmem>>, %arg5: memref<4x20x16xf32, #tpu.memory_space<vmem>>, %arg6: memref<4x16x20xf32, #tpu.memory_space<vmem>>, %arg7: memref<4x16x16xf32, #tpu.memory_space<vmem>>) attributes {dimension_semantics = [#tpu.dimension_semantics<parallel>, #tpu.dimension_semantics<parallel>, #tpu.dimension_semantics<arbitrary>], iteration_bounds = array<i64: 2, 1, 4>, scalar_prefetch = 0 : i64, scratch_operands = 3 : i64, tpu.core_type = #tpu.core_type<tc>, window_params = [{transform_indices = @transform_0, window_bounds = array<i64: 1, 4, 16, 16>}, {transform_indices = @transform_1, window_bounds = array<i64: 1, 4, 16, 16>}]} {
    %c0_i32 = arith.constant 0 : i32
    %0 = arith.cmpi eq, %arg2, %c0_i32 : i32
    %1 = arith.extui %0 : i1 to i32
    %cst = arith.constant 0xFF800000 : f32
    %c0_i32_0 = arith.constant 0 : i32
    %2 = arith.cmpi ne, %1, %c0_i32_0 : i32
    scf.if %2 {
      %c0_9 = arith.constant 0 : index
      %c0_10 = arith.constant 0 : index
      %c0_11 = arith.constant 0 : index
      %c0_12 = arith.constant 0 : index
      %10 = vector.load %arg3[%c0_9, %c0_10, %c0_11, %c0_12] : memref<1x4x16x16xf32, #tpu.memory_space<vmem>>, vector<1x4x16x16xf32>
      %11 = vector.shape_cast %10 : vector<1x4x16x16xf32> to vector<4x16x16xf32>
      %c0_13 = arith.constant 0 : index
      %c0_14 = arith.constant 0 : index
      %c0_15 = arith.constant 0 : index
      %12 = vector.load %arg7[%c0_13, %c0_14, %c0_15] : memref<4x16x16xf32, #tpu.memory_space<vmem>>, vector<4x16x16xf32>
      tpu.vector_store %arg7[%c0_13, %c0_14, %c0_15], %11 {strides = array<i32>} : memref<4x16x16xf32, #tpu.memory_space<vmem>>, vector<4x16x16xf32>,
      %13 = vector.broadcast %cst : f32 to vector<4x2x16xf32>
      %c0_16 = arith.constant 0 : index
      %c0_17 = arith.constant 0 : index
      %c0_18 = arith.constant 0 : index
      %14 = vector.load %arg5[%c0_16, %c0_17, %c0_18] : memref<4x20x16xf32, #tpu.memory_space<vmem>>, vector<4x2x16xf32>
      tpu.vector_store %arg5[%c0_16, %c0_17, %c0_18], %13 {strides = array<i32>} : memref<4x20x16xf32, #tpu.memory_space<vmem>>, vector<4x2x16xf32>,
      %15 = vector.broadcast %cst : f32 to vector<4x2x16xf32>
      %c0_19 = arith.constant 0 : index
      %c18 = arith.constant 18 : index
      %c0_20 = arith.constant 0 : index
      %16 = vector.load %arg5[%c0_19, %c18, %c0_20] : memref<4x20x16xf32, #tpu.memory_space<vmem>>, vector<4x2x16xf32>
      tpu.vector_store %arg5[%c0_19, %c18, %c0_20], %15 {strides = array<i32>} : memref<4x20x16xf32, #tpu.memory_space<vmem>>, vector<4x2x16xf32>,
      %17 = vector.broadcast %cst : f32 to vector<4x16x2xf32>
      %c0_21 = arith.constant 0 : index
      %c0_22 = arith.constant 0 : index
      %c0_23 = arith.constant 0 : index
      %18 = vector.load %arg6[%c0_21, %c0_22, %c0_23] : memref<4x16x20xf32, #tpu.memory_space<vmem>>, vector<4x16x2xf32>
      tpu.vector_store %arg6[%c0_21, %c0_22, %c0_23], %17 {strides = array<i32>} : memref<4x16x20xf32, #tpu.memory_space<vmem>>, vector<4x16x2xf32>,
      %19 = vector.broadcast %cst : f32 to vector<4x16x2xf32>
      %c0_24 = arith.constant 0 : index
      %c0_25 = arith.constant 0 : index
      %c18_26 = arith.constant 18 : index
      %20 = vector.load %arg6[%c0_24, %c0_25, %c18_26] : memref<4x16x20xf32, #tpu.memory_space<vmem>>, vector<4x16x2xf32>
      tpu.vector_store %arg6[%c0_24, %c0_25, %c18_26], %19 {strides = array<i32>} : memref<4x16x20xf32, #tpu.memory_space<vmem>>, vector<4x16x2xf32>,
    } else {
    }
    %c0_i32_1 = arith.constant 0 : i32
    %3 = arith.cmpi sgt, %arg2, %c0_i32_1 : i32
    %4 = arith.extui %3 : i1 to i32
    %c0_i32_2 = arith.constant 0 : i32
    %5 = arith.cmpi ne, %4, %c0_i32_2 : i32
    scf.if %5 {
      %c0_9 = arith.constant 0 : index
      %c0_10 = arith.constant 0 : index
      %c0_11 = arith.constant 0 : index
      %10 = vector.load %arg7[%c0_9, %c0_10, %c0_11] : memref<4x16x16xf32, #tpu.memory_space<vmem>>, vector<4x16x16xf32>
      %c0_12 = arith.constant 0 : index
      %c2 = arith.constant 2 : index
      %c0_13 = arith.constant 0 : index
      %11 = vector.load %arg5[%c0_12, %c2, %c0_13] : memref<4x20x16xf32, #tpu.memory_space<vmem>>, vector<4x16x16xf32>
      tpu.vector_store %arg5[%c0_12, %c2, %c0_13], %10 {strides = array<i32>} : memref<4x20x16xf32, #tpu.memory_space<vmem>>, vector<4x16x16xf32>,
      %c0_14 = arith.constant 0 : index
      %c0_15 = arith.constant 0 : index
      %c0_16 = arith.constant 0 : index
      %12 = vector.load %arg5[%c0_14, %c0_15, %c0_16] : memref<4x20x16xf32, #tpu.memory_space<vmem>>, vector<4x16x16xf32>
      %c0_17 = arith.constant 0 : index
      %c1 = arith.constant 1 : index
      %c0_18 = arith.constant 0 : index
      %13 = vector.load %arg5[%c0_17, %c1, %c0_18] : memref<4x20x16xf32, #tpu.memory_space<vmem>>, vector<4x16x16xf32>
      %14 = arith.maximumf %12, %13 : vector<4x16x16xf32>
      %c0_19 = arith.constant 0 : index
      %c2_20 = arith.constant 2 : index
      %c0_21 = arith.constant 0 : index
      %15 = vector.load %arg5[%c0_19, %c2_20, %c0_21] : memref<4x20x16xf32, #tpu.memory_space<vmem>>, vector<4x16x16xf32>
      %c0_22 = arith.constant 0 : index
      %c3 = arith.constant 3 : index
      %c0_23 = arith.constant 0 : index
      %16 = vector.load %arg5[%c0_22, %c3, %c0_23] : memref<4x20x16xf32, #tpu.memory_space<vmem>>, vector<4x16x16xf32>
      %17 = arith.maximumf %15, %16 : vector<4x16x16xf32>
      %18 = arith.maximumf %14, %17 : vector<4x16x16xf32>
      %c0_24 = arith.constant 0 : index
      %c4 = arith.constant 4 : index
      %c0_25 = arith.constant 0 : index
      %19 = vector.load %arg5[%c0_24, %c4, %c0_25] : memref<4x20x16xf32, #tpu.memory_space<vmem>>, vector<4x16x16xf32>
      %20 = arith.maximumf %18, %19 : vector<4x16x16xf32>
      %c0_26 = arith.constant 0 : index
      %c0_27 = arith.constant 0 : index
      %c2_28 = arith.constant 2 : index
      %21 = vector.load %arg6[%c0_26, %c0_27, %c2_28] : memref<4x16x20xf32, #tpu.memory_space<vmem>>, vector<4x16x16xf32>
      tpu.vector_store %arg6[%c0_26, %c0_27, %c2_28], %20 {strides = array<i32>} : memref<4x16x20xf32, #tpu.memory_space<vmem>>, vector<4x16x16xf32>,
      %c0_29 = arith.constant 0 : index
      %c0_30 = arith.constant 0 : index
      %c0_31 = arith.constant 0 : index
      %22 = vector.load %arg6[%c0_29, %c0_30, %c0_31] : memref<4x16x20xf32, #tpu.memory_space<vmem>>, vector<4x16x16xf32>
      %c0_32 = arith.constant 0 : index
      %c0_33 = arith.constant 0 : index
      %c1_34 = arith.constant 1 : index
      %23 = vector.load %arg6[%c0_32, %c0_33, %c1_34] : memref<4x16x20xf32, #tpu.memory_space<vmem>>, vector<4x16x16xf32>
      %24 = arith.maximumf %22, %23 : vector<4x16x16xf32>
      %c0_35 = arith.constant 0 : index
      %c0_36 = arith.constant 0 : index
      %c2_37 = arith.constant 2 : index
      %25 = vector.load %arg6[%c0_35, %c0_36, %c2_37] : memref<4x16x20xf32, #tpu.memory_space<vmem>>, vector<4x16x16xf32>
      %c0_38 = arith.constant 0 : index
      %c0_39 = arith.constant 0 : index
      %c3_40 = arith.constant 3 : index
      %26 = vector.load %arg6[%c0_38, %c0_39, %c3_40] : memref<4x16x20xf32, #tpu.memory_space<vmem>>, vector<4x16x16xf32>
      %27 = arith.maximumf %25, %26 : vector<4x16x16xf32>
      %28 = arith.maximumf %24, %27 : vector<4x16x16xf32>
      %c0_41 = arith.constant 0 : index
      %c0_42 = arith.constant 0 : index
      %c4_43 = arith.constant 4 : index
      %29 = vector.load %arg6[%c0_41, %c0_42, %c4_43] : memref<4x16x20xf32, #tpu.memory_space<vmem>>, vector<4x16x16xf32>
      %30 = arith.maximumf %28, %29 : vector<4x16x16xf32>
      %c0_44 = arith.constant 0 : index
      %c0_45 = arith.constant 0 : index
      %c0_46 = arith.constant 0 : index
      %31 = vector.load %arg7[%c0_44, %c0_45, %c0_46] : memref<4x16x16xf32, #tpu.memory_space<vmem>>, vector<4x16x16xf32>
      tpu.vector_store %arg7[%c0_44, %c0_45, %c0_46], %30 {strides = array<i32>} : memref<4x16x16xf32, #tpu.memory_space<vmem>>, vector<4x16x16xf32>,
    } else {
    }
    %c0 = arith.constant 0 : index
    %c0_3 = arith.constant 0 : index
    %c0_4 = arith.constant 0 : index
    %6 = vector.load %arg7[%c0, %c0_3, %c0_4] : memref<4x16x16xf32, #tpu.memory_space<vmem>>, vector<4x16x16xf32>
    %c0_5 = arith.constant 0 : index
    %c0_6 = arith.constant 0 : index
    %c0_7 = arith.constant 0 : index
    %c0_8 = arith.constant 0 : index
    %7 = vector.load %arg4[%c0_5, %c0_6, %c0_7, %c0_8] : memref<1x4x16x16xf32, #tpu.memory_space<vmem>>, vector<1x4x16x16xf32>
    %8 = vector.shape_cast %7 : vector<1x4x16x16xf32> to vector<4x16x16xf32>
    %9 = vector.shape_cast %6 : vector<4x16x16xf32> to vector<1x4x16x16xf32>
    tpu.vector_store %arg4[%c0_5, %c0_6, %c0_7, %c0_8], %9 {strides = array<i32>} : memref<1x4x16x16xf32, #tpu.memory_space<vmem>>, vector<1x4x16x16xf32>,
    return
  }
  func.func @transform_0(%arg0: i32, %arg1: i32, %arg2: i32) -> (i32, i32, i32, i32) {
    %c0_i32 = arith.constant 0 : i32
    %c0_i32_0 = arith.constant 0 : i32
    %c0_i32_1 = arith.constant 0 : i32
    return %arg0, %arg1, %c0_i32, %c0_i32_0 : i32, i32, i32, i32
  }
  func.func @transform_1(%arg0: i32, %arg1: i32, %arg2: i32) -> (i32, i32, i32, i32) {
    %c1_i32 = arith.constant 1 : i32
    %0 = arith.muli %arg2, %c1_i32 : i32
    %1 = arith.addi %0, %arg1 : i32
    %c0_i32 = arith.constant 0 : i32
    %c0_i32_0 = arith.constant 0 : i32
    %c0_i32_1 = arith.constant 0 : i32
    return %arg0, %1, %c0_i32, %c0_i32_0 : i32, i32, i32, i32
  }
}

</mosaic_0001>

<llo_original>
// kernel: tpu_custom_call.1
$region0: #{tpu_custom_call.1}
  #allocation0 [shape = 'u32[]', space=smem, size = 0x4, offset = 0x4, fixed_abs, tag = 'smem constant byte address 0x4 - core index']
  #allocation1 [shape = 'u32[144,128]{1,0:T(1,128)}', space=vmem, size = 0x12000, scoped, tag = 'internal scratch']
  #allocation2 [shape = 'f32[4,20,16]{2,1,0:T(8,128)}', space=vmem, size = 0xc000, scoped, tag = 'scratch operand']
  #allocation3 [shape = 'f32[4,16,20]{2,1,0:T(8,128)}', space=vmem, size = 0x8000, scoped, tag = 'scratch operand']
  #allocation4 [shape = 'f32[4,16,16]{2,1,0:T(8,128)}', space=vmem, size = 0x8000, scoped, tag = 'scratch operand']
  %s0 = inlined_call_operand.hbm [shape: f32[2,4,16,16], index: 0, kind: input, shape index: {}]
  %s1 = inlined_call_operand.hbm [shape: f32[2,16,16,16], index: 1, kind: output, shape index: {}]
  %s2 = sld [smem:[#allocation0]]
  $region49: #{tpu_custom_call.1} parent=0
    _
  %s4 = ssub.s32 1, %s2
  %s5 = scalar_select 0, %s4, %s2
  $region1: #{tpu_custom_call.1} parent=0
    #allocation5 [shape = 'u8[65536]{0}', space=vmem, size = 0x10000, scoped, tag = 'input window, operand 0']
    #allocation6 [shape = 's32[2]{0}', space=sflag, size = 0x8, scoped, tag = 'scoped memory for tpu_custom_call.1']
    #allocation7 [shape = 's32[2]{0}', space=sflag, size = 0x8, scoped, tag = 'scoped memory for tpu_custom_call.1']
    #allocation8 [shape = 'u8[65536]{0}', space=vmem, size = 0x10000, scoped, tag = 'output window, operand 0']
    %6 = vsyncpa [#allocation6], 0
    %s7 = scalar_lea.sflag [#allocation6], 1
    %8 = vsyncpa %s7, 0
    %9 = vsyncpa [#allocation7], 0
    %s10 = scalar_lea.sflag [#allocation7], 1
    %11 = vsyncpa %s10, 0
    loop: start=0, step=1, limit=10
    $region2: #{tpu_custom_call.1} parent=1 // loop_pre_header
      _
    $region3: #{tpu_custom_call.1} parent=1 // loop_header
      %s13 = sphi 0, %s17
      %p14 = scmp.ge.s32.totalorder %s13, 10
      %s20 = sphi 0, %s39
      %s21 = sphi 0, %s35
      %s22 = sphi 0, %s31
      %s23 = sphi 0, %s20
      %s24 = sphi 0, %s21
      %s25 = sphi 0, %s22
      %s26 = sphi 0, %s23
      %s27 = sphi 0, %s24
      %s28 = sphi 0, %s25
      %s44 = sphi 0, %s46
      %s47 = sphi 0, %s44
      %s48 = sphi 0, %s47
      %s64 = sphi 0, %s48
      %s74 = sphi 0, %s76
      %s77 = sphi 0, %s74
      %s78 = sphi 0, %s77
      %s94 = sphi 0, %s78
    $region4: #{tpu_custom_call.1} parent=1 // loop_header_branch
      %16 = sbr.rel (%p14) target = $region8
    $region5: #{tpu_custom_call.1} parent=1 // loop_body
      %s18 = ssub.s32 %s13, 1
      %s19 = ssub.s32 %s13, 2
      %s29 = sadd.s32 1, %s22
      %p30 = scmp.ge.s32.totalorder %s29, 4
      %s31 = scalar_select %p30, 0, %s29
      %s32 = sadd.s32 1, %s21
      %s33 = scalar_select %p30, %s32, %s21
      %p34 = scmp.ge.s32.totalorder %s33, 1
      %s35 = scalar_select %p34, 0, %s33
      %s36 = sadd.s32 1, %s20
      %s37 = scalar_select %p34, %s36, %s20
      %p38 = scmp.ge.s32.totalorder %s37, 2
      %s39 = scalar_select %p38, 0, %s37
      %s40 = ssub.s32 %s20, %s39
      %s41 = ssub.s32 %s21, %s35
      %s42 = sor.u32 %s40, %s41
      %p43 = scmp.eq.s32.totalorder %s42, 0
      %s45 = sadd.s32 %s44, 1
      %s46 = scalar_select %p43, %s44, %s45
      %p49 = pneg %p43
      %p50 = scmp.eq.s32.totalorder %s13, 7
      %p51 = por %p49, %p50
      %p52 = scmp.ne.s32.totalorder %s44, %s47
      %p53 = scmp.eq.s32.totalorder %s13, 0
      %p54 = por %p52, %p53
      %p55 = scmp.ne.s32.totalorder %s44, %s47
      %p56 = scmp.eq.s32.totalorder %s18, 7
      %p57 = por %p55, %p56
      %p58 = scmp.ne.s32.totalorder %s47, %s48
      %p59 = scmp.eq.s32.totalorder %s18, 0
      %p60 = por %p58, %p59
      %p61 = scmp.ne.s32.totalorder %s47, %s48
      %p62 = scmp.eq.s32.totalorder %s19, 7
      %p63 = por %p61, %p62
      %p65 = scmp.ne.s32.totalorder %s48, %s64
      %p66 = scmp.eq.s32.totalorder %s19, 0
      %p67 = por %p65, %p66
      %s68 = sadd.s32 %s22, %s21
      %s69 = sadd.s32 %s31, %s35
      %s70 = ssub.s32 %s20, %s39
      %s71 = ssub.s32 %s68, %s69
      %s72 = sor.u32 %s70, %s71
      %p73 = scmp.eq.s32.totalorder %s72, 0
      %s75 = sadd.s32 %s74, 1
      %s76 = scalar_select %p73, %s74, %s75
      %p79 = pneg %p73
      %p80 = scmp.eq.s32.totalorder %s13, 7
      %p81 = por %p79, %p80
      %p82 = scmp.ne.s32.totalorder %s74, %s77
      %p83 = scmp.eq.s32.totalorder %s13, 0
      %p84 = por %p82, %p83
      %p85 = scmp.ne.s32.totalorder %s74, %s77
      %p86 = scmp.eq.s32.totalorder %s18, 7
      %p87 = por %p85, %p86
      %p88 = scmp.ne.s32.totalorder %s77, %s78
      %p89 = scmp.eq.s32.totalorder %s18, 0
      %p90 = por %p88, %p89
      %p91 = scmp.ne.s32.totalorder %s77, %s78
      %p92 = scmp.eq.s32.totalorder %s19, 7
      %p93 = por %p91, %p92
      %p95 = scmp.ne.s32.totalorder %s78, %s94
      %p96 = scmp.eq.s32.totalorder %s19, 0
      %p97 = por %p95, %p96
      %p98 = scmp.le.s32.totalorder 1, %s13
      %p99 = scmp.lt.s32.totalorder %s13, 9
      %p100 = pnand %p98, %p99
      %p101 = pneg %p100
      // Predicated region
      $region9: #{tpu_custom_call.1} parent=5 // pred_check
        _
      $region10: #{tpu_custom_call.1} parent=5 // pred_check_branch
        %103 = sbr.rel (%p100) target = $region12
      $region11: #{tpu_custom_call.1} parent=5 // pred_region
        %s104 = ssub.s32 %s13, 1
      $region12: #{tpu_custom_call.1} parent=5 // pred_fallthru
        _
      %p105 = scmp.lt.s32.totalorder %s13, 8
      // Predicated region
      $region13: #{tpu_custom_call.1} parent=5 // pred_check
        %p106 = pneg %p105
      $region14: #{tpu_custom_call.1} parent=5 // pred_check_branch
        %108 = sbr.rel (%p106) target = $region16
      $region15: #{tpu_custom_call.1} parent=5 // pred_region
        // Predicated region
        $region17: #{tpu_custom_call.1} parent=15 // pred_check
          %p109 = pneg %p54
        $region18: #{tpu_custom_call.1} parent=15 // pred_check_branch
          %111 = sbr.rel (%p109) target = $region20
        $region19: #{tpu_custom_call.1} parent=15 // pred_region
          %s112 = sand.u32 %s44, 1
          %s113 = scalar_lea.sflag [#allocation6], %s112
          %s114 = sand.u32 %s44, 1
          %s115 = smul.addr %s114, 64
          %s116 = scalar_lea.vmem [#allocation5], %s115
          %s117 = smul.u32 4, %s21
          %s119 = ssub.s32 1024, 1024
          %120 = vsyncadd %s113, %s119
          %s121 = smul.addr %s117, 2
          %s122 = smul.addr %s20, 8
          %s123 = sadd.s32 %s121, %s122
          %s124 = smul.addr %s123, 128
          %s125 = scalar_lea.hbm %s0, %s124
          %s126 = sshll.u32 %s116, 4
          %s127 = int_to_ptr.vmem [resolvable:$true] %s126
          %132 = dma.hbm_to_vmem [thread:$0]  %s125, 1024, %s127, %s113, 128, 128, 8
        $region20: #{tpu_custom_call.1} parent=15 // pred_fallthru
          _
      $region16: #{tpu_custom_call.1} parent=5 // pred_fallthru
        _
      %p133 = scmp.le.s32.totalorder 1, %s13
      %p134 = scmp.lt.s32.totalorder %s13, 9
      %p135 = pnand %p133, %p134
      %p136 = pneg %p135
      // Predicated region
      $region21: #{tpu_custom_call.1} parent=5 // pred_check
        _
      $region22: #{tpu_custom_call.1} parent=5 // pred_check_branch
        %138 = sbr.rel (%p135) target = $region24
      $region23: #{tpu_custom_call.1} parent=5 // pred_region
        %s139 = ssub.s32 %s13, 1
        %s140 = sand.u32 %s47, 1
        %s141 = scalar_lea.sflag [#allocation6], %s140
        %s142 = sand.u32 %s47, 1
        %s143 = smul.addr %s142, 64
        %s144 = scalar_lea.vmem [#allocation5], %s143
        // Predicated region
        $region25: #{tpu_custom_call.1} parent=23 // pred_check
          %p145 = pneg %p60
        $region26: #{tpu_custom_call.1} parent=23 // pred_check_branch
          %147 = sbr.rel (%p145) target = $region28
        $region27: #{tpu_custom_call.1} parent=23 // pred_region
          %148 = dma.done %s141, 1024
        $region28: #{tpu_custom_call.1} parent=23 // pred_fallthru
          _
        %s149 = sand.u32 %s47, 1
        %s150 = scalar_lea.sflag [#allocation6], %s149
        %s151 = sand.u32 %s47, 1
        %s152 = smul.addr %s151, 64
        %s153 = scalar_lea.vmem [#allocation5], %s152
        %p154 = pneg %p60
        %p155 = pneg %p57
        %p156 = pneg %p90
        %p157 = pneg %p87
        %s158 = sand.u32 %s77, 1
        %s159 = scalar_lea.sflag [#allocation7], %s158
        %s160 = sand.u32 %s77, 1
        %s161 = smul.addr %s160, 64
        %s162 = scalar_lea.vmem [#allocation8], %s161
        %s163 = smul.u32 4, %s24
        %s164 = sadd.s32 %s25, %s24
        %s165 = smul.u32 4, %s164
        %p166 = scmp.eq.s32.totalorder %s25, 0
        // Predicated region
        $region29: #{tpu_custom_call.1} parent=23 // pred_check
          %p167 = pneg %p166
        $region30: #{tpu_custom_call.1} parent=23 // pred_check_branch
          %169 = sbr.rel (%p167) target = $region32
        $region31: #{tpu_custom_call.1} parent=23 // pred_region
          %v170 = vld [vmem:[%s144] sm:$0xff]
          %v171 = vld [vmem:[%s144 + $0x8] sm:$0xff]
          %v172 = vld [vmem:[%s144 + $0x10] sm:$0xff]
          %v173 = vld [vmem:[%s144 + $0x18] sm:$0xff]
          %v174 = vld [vmem:[%s144 + $0x20] sm:$0xff]
          %v175 = vld [vmem:[%s144 + $0x28] sm:$0xff]
          %v176 = vld [vmem:[%s144 + $0x30] sm:$0xff]
          %v177 = vld [vmem:[%s144 + $0x38] sm:$0xff]
          %vm178 = vcmask 130048
          %179 = vst.msk [vmem:[#allocation4] sm:$0xff] %vm178, %v170
          %180 = vst.msk [vmem:[#allocation4 + $0x8] sm:$0xff] %vm178, %v171
          %181 = vst.msk [vmem:[#allocation4 + $0x10] sm:$0xff] %vm178, %v172
          %182 = vst.msk [vmem:[#allocation4 + $0x18] sm:$0xff] %vm178, %v173
          %183 = vst.msk [vmem:[#allocation4 + $0x20] sm:$0xff] %vm178, %v174
          %184 = vst.msk [vmem:[#allocation4 + $0x28] sm:$0xff] %vm178, %v175
          %185 = vst.msk [vmem:[#allocation4 + $0x30] sm:$0xff] %vm178, %v176
          %186 = vst.msk [vmem:[#allocation4 + $0x38] sm:$0xff] %vm178, %v177
          %vm187 = vcmask 123904
          %188 = vst.msk [vmem:[#allocation2] sm:$0x3] %vm187, -inf
          %189 = vst.msk [vmem:[#allocation2 + $0x18] sm:$0x3] %vm187, -inf
          %190 = vst.msk [vmem:[#allocation2 + $0x30] sm:$0x3] %vm187, -inf
          %191 = vst.msk [vmem:[#allocation2 + $0x48] sm:$0x3] %vm187, -inf
          %192 = vst.msk [vmem:[#allocation2 + $0x12] sm:$0x3] %vm187, -inf
          %193 = vst.msk [vmem:[#allocation2 + $0x2a] sm:$0x3] %vm187, -inf
          %194 = vst.msk [vmem:[#allocation2 + $0x42] sm:$0x3] %vm187, -inf
          %195 = vst.msk [vmem:[#allocation2 + $0x5a] sm:$0x3] %vm187, -inf
          %vm196 = vcmask 15360
          %197 = vst.msk [vmem:[#allocation3] sm:$0xff] %vm196, -inf
          %198 = vst.msk [vmem:[#allocation3 + $0x8] sm:$0xff] %vm196, -inf
          %199 = vst.msk [vmem:[#allocation3 + $0x10] sm:$0xff] %vm196, -inf
          %200 = vst.msk [vmem:[#allocation3 + $0x18] sm:$0xff] %vm196, -inf
          %201 = vst.msk [vmem:[#allocation3 + $0x20] sm:$0xff] %vm196, -inf
          %202 = vst.msk [vmem:[#allocation3 + $0x28] sm:$0xff] %vm196, -inf
          %203 = vst.msk [vmem:[#allocation3 + $0x30] sm:$0xff] %vm196, -inf
          %204 = vst.msk [vmem:[#allocation3 + $0x38] sm:$0xff] %vm196, -inf
          %vm205 = vcmask 162960
          %206 = vst.msk [vmem:[#allocation3] sm:$0xff] %vm205, -inf
          %207 = vst.msk [vmem:[#allocation3 + $0x8] sm:$0xff] %vm205, -inf
          %208 = vst.msk [vmem:[#allocation3 + $0x10] sm:$0xff] %vm205, -inf
          %209 = vst.msk [vmem:[#allocation3 + $0x18] sm:$0xff] %vm205, -inf
          %210 = vst.msk [vmem:[#allocation3 + $0x20] sm:$0xff] %vm205, -inf
          %211 = vst.msk [vmem:[#allocation3 + $0x28] sm:$0xff] %vm205, -inf
          %212 = vst.msk [vmem:[#allocation3 + $0x30] sm:$0xff] %vm205, -inf
          %213 = vst.msk [vmem:[#allocation3 + $0x38] sm:$0xff] %vm205, -inf
        $region32: #{tpu_custom_call.1} parent=23 // pred_fallthru
          _
        %p214 = scmp.gt.s32.totalorder %s25, 0
        // Predicated region
        $region33: #{tpu_custom_call.1} parent=23 // pred_check
          %p215 = pneg %p214
        $region34: #{tpu_custom_call.1} parent=23 // pred_check_branch
          %217 = sbr.rel (%p215) target = $region36
        $region35: #{tpu_custom_call.1} parent=23 // pred_region
          %v218 = vld [vmem:[#allocation4] sm:$0xff]
          %v219 = vld [vmem:[#allocation4 + $0x8] sm:$0xff]
          %v220 = vld [vmem:[#allocation4 + $0x10] sm:$0xff]
          %v221 = vld [vmem:[#allocation4 + $0x18] sm:$0xff]
          %v222 = vld [vmem:[#allocation4 + $0x20] sm:$0xff]
          %v223 = vld [vmem:[#allocation4 + $0x28] sm:$0xff]
          %v224 = vld [vmem:[#allocation4 + $0x30] sm:$0xff]
          %v225 = vld [vmem:[#allocation4 + $0x38] sm:$0xff]
          %vm226 = vcmask 130048
          %227 = vst.msk [vmem:[#allocation2 + $0x2] sm:$0xff] %vm226, %v218
          %228 = vst.msk [vmem:[#allocation2 + $0xa] sm:$0xff] %vm226, %v219
          %229 = vst.msk [vmem:[#allocation2 + $0x1a] sm:$0xff] %vm226, %v220
          %230 = vst.msk [vmem:[#allocation2 + $0x22] sm:$0xff] %vm226, %v221
          %231 = vst.msk [vmem:[#allocation2 + $0x32] sm:$0xff] %vm226, %v222
          %232 = vst.msk [vmem:[#allocation2 + $0x3a] sm:$0xff] %vm226, %v223
          %233 = vst.msk [vmem:[#allocation2 + $0x4a] sm:$0xff] %vm226, %v224
          %234 = vst.msk [vmem:[#allocation2 + $0x52] sm:$0xff] %vm226, %v225
          %v235 = vld [vmem:[#allocation2] sm:$0xff]
          %v236 = vld [vmem:[#allocation2 + $0x8] sm:$0xff]
          %v237 = vld [vmem:[#allocation2 + $0x18] sm:$0xff]
          %v238 = vld [vmem:[#allocation2 + $0x20] sm:$0xff]
          %v239 = vld [vmem:[#allocation2 + $0x30] sm:$0xff]
          %v240 = vld [vmem:[#allocation2 + $0x38] sm:$0xff]
          %v241 = vld [vmem:[#allocation2 + $0x48] sm:$0xff]
          %v242 = vld [vmem:[#allocation2 + $0x50] sm:$0xff]
          %v243 = vld [vmem:[#allocation2 + $0x1] sm:$0xff]
          %v244 = vld [vmem:[#allocation2 + $0x9] sm:$0xff]
          %v245 = vld [vmem:[#allocation2 + $0x19] sm:$0xff]
          %v246 = vld [vmem:[#allocation2 + $0x21] sm:$0xff]
          %v247 = vld [vmem:[#allocation2 + $0x31] sm:$0xff]
          %v248 = vld [vmem:[#allocation2 + $0x39] sm:$0xff]
          %v249 = vld [vmem:[#allocation2 + $0x49] sm:$0xff]
          %v250 = vld [vmem:[#allocation2 + $0x51] sm:$0xff]
          %v251 = vmax.f32 %v235, %v243
          %v252 = vmax.f32 %v236, %v244
          %v253 = vmax.f32 %v237, %v245
          %v254 = vmax.f32 %v238, %v246
          %v255 = vmax.f32 %v239, %v247
          %v256 = vmax.f32 %v240, %v248
          %v257 = vmax.f32 %v241, %v249
          %v258 = vmax.f32 %v242, %v250
          %v259 = vld [vmem:[#allocation2 + $0x2] sm:$0xff]
          %v260 = vld [vmem:[#allocation2 + $0xa] sm:$0xff]
          %v261 = vld [vmem:[#allocation2 + $0x1a] sm:$0xff]
          %v262 = vld [vmem:[#allocation2 + $0x22] sm:$0xff]
          %v263 = vld [vmem:[#allocation2 + $0x32] sm:$0xff]
          %v264 = vld [vmem:[#allocation2 + $0x3a] sm:$0xff]
          %v265 = vld [vmem:[#allocation2 + $0x4a] sm:$0xff]
          %v266 = vld [vmem:[#allocation2 + $0x52] sm:$0xff]
          %v267 = vld [vmem:[#allocation2 + $0x3] sm:$0xff]
          %v268 = vld [vmem:[#allocation2 + $0xb] sm:$0xff]
          %v269 = vld [vmem:[#allocation2 + $0x1b] sm:$0xff]
          %v270 = vld [vmem:[#allocation2 + $0x23] sm:$0xff]
          %v271 = vld [vmem:[#allocation2 + $0x33] sm:$0xff]
          %v272 = vld [vmem:[#allocation2 + $0x3b] sm:$0xff]
          %v273 = vld [vmem:[#allocation2 + $0x4b] sm:$0xff]
          %v274 = vld [vmem:[#allocation2 + $0x53] sm:$0xff]
          %v275 = vmax.f32 %v259, %v267
          %v276 = vmax.f32 %v260, %v268
          %v277 = vmax.f32 %v261, %v269
          %v278 = vmax.f32 %v262, %v270
          %v279 = vmax.f32 %v263, %v271
          %v280 = vmax.f32 %v264, %v272
          %v281 = vmax.f32 %v265, %v273
          %v282 = vmax.f32 %v266, %v274
          %v283 = vmax.f32 %v251, %v275
          %v284 = vmax.f32 %v252, %v276
          %v285 = vmax.f32 %v253, %v277
          %v286 = vmax.f32 %v254, %v278
          %v287 = vmax.f32 %v255, %v279
          %v288 = vmax.f32 %v256, %v280
          %v289 = vmax.f32 %v257, %v281
          %v290 = vmax.f32 %v258, %v282
          %v291 = vld [vmem:[#allocation2 + $0x4] sm:$0xff]
          %v292 = vld [vmem:[#allocation2 + $0xc] sm:$0xff]
          %v293 = vld [vmem:[#allocation2 + $0x1c] sm:$0xff]
          %v294 = vld [vmem:[#allocation2 + $0x24] sm:$0xff]
          %v295 = vld [vmem:[#allocation2 + $0x34] sm:$0xff]
          %v296 = vld [vmem:[#allocation2 + $0x3c] sm:$0xff]
          %v297 = vld [vmem:[#allocation2 + $0x4c] sm:$0xff]
          %v298 = vld [vmem:[#allocation2 + $0x54] sm:$0xff]
          %v299 = vmax.f32 %v283, %v291
          %v300 = vmax.f32 %v284, %v292
          %v301 = vmax.f32 %v285, %v293
          %v302 = vmax.f32 %v286, %v294
          %v303 = vmax.f32 %v287, %v295
          %v304 = vmax.f32 %v288, %v296
          %v305 = vmax.f32 %v289, %v297
          %v306 = vmax.f32 %v290, %v298
          %315 = vrot.lane.b32.xlu0 %v299, 2
          %v316 = vpop.permute.xlu0 %315
          %317 = vrot.lane.b32.xlu0 %v300, 2
          %v318 = vpop.permute.xlu0 %317
          %319 = vrot.lane.b32.xlu0 %v301, 2
          %v320 = vpop.permute.xlu0 %319
          %321 = vrot.lane.b32.xlu0 %v302, 2
          %v322 = vpop.permute.xlu0 %321
          %323 = vrot.lane.b32.xlu0 %v303, 2
          %v324 = vpop.permute.xlu0 %323
          %325 = vrot.lane.b32.xlu0 %v304, 2
          %v326 = vpop.permute.xlu0 %325
          %327 = vrot.lane.b32.xlu0 %v305, 2
          %v328 = vpop.permute.xlu0 %327
          %329 = vrot.lane.b32.xlu0 %v306, 2
          %v330 = vpop.permute.xlu0 %329
          %vm339 = vcmask 146448
          %340 = vst.msk [vmem:[#allocation3] sm:$0xff] %vm339, %v316
          %341 = vst.msk [vmem:[#allocation3 + $0x8] sm:$0xff] %vm339, %v318
          %342 = vst.msk [vmem:[#allocation3 + $0x10] sm:$0xff] %vm339, %v320
          %343 = vst.msk [vmem:[#allocation3 + $0x18] sm:$0xff] %vm339, %v322
          %344 = vst.msk [vmem:[#allocation3 + $0x20] sm:$0xff] %vm339, %v324
          %345 = vst.msk [vmem:[#allocation3 + $0x28] sm:$0xff] %vm339, %v326
          %346 = vst.msk [vmem:[#allocation3 + $0x30] sm:$0xff] %vm339, %v328
          %347 = vst.msk [vmem:[#allocation3 + $0x38] sm:$0xff] %vm339, %v330
          %v348 = vld [vmem:[#allocation3] sm:$0xff]
          %v349 = vld [vmem:[#allocation3 + $0x8] sm:$0xff]
          %v350 = vld [vmem:[#allocation3 + $0x10] sm:$0xff]
          %v351 = vld [vmem:[#allocation3 + $0x18] sm:$0xff]
          %v352 = vld [vmem:[#allocation3 + $0x20] sm:$0xff]
          %v353 = vld [vmem:[#allocation3 + $0x28] sm:$0xff]
          %v354 = vld [vmem:[#allocation3 + $0x30] sm:$0xff]
          %v355 = vld [vmem:[#allocation3 + $0x38] sm:$0xff]
          %364 = vrot.lane.b32.xlu0 %v348, 127
          %v365 = vpop.permute.xlu0 %364
          %366 = vrot.lane.b32.xlu0 %v349, 127
          %v367 = vpop.permute.xlu0 %366
          %368 = vrot.lane.b32.xlu0 %v350, 127
          %v369 = vpop.permute.xlu0 %368
          %370 = vrot.lane.b32.xlu0 %v351, 127
          %v371 = vpop.permute.xlu0 %370
          %372 = vrot.lane.b32.xlu0 %v352, 127
          %v373 = vpop.permute.xlu0 %372
          %374 = vrot.lane.b32.xlu0 %v353, 127
          %v375 = vpop.permute.xlu0 %374
          %376 = vrot.lane.b32.xlu0 %v354, 127
          %v377 = vpop.permute.xlu0 %376
          %378 = vrot.lane.b32.xlu0 %v355, 127
          %v379 = vpop.permute.xlu0 %378
          %v388 = vmax.f32 %v348, %v365
          %v389 = vmax.f32 %v349, %v367
          %v390 = vmax.f32 %v350, %v369
          %v391 = vmax.f32 %v351, %v371
          %v392 = vmax.f32 %v352, %v373
          %v393 = vmax.f32 %v353, %v375
          %v394 = vmax.f32 %v354, %v377
          %v395 = vmax.f32 %v355, %v379
          %404 = vrot.lane.b32.xlu0 %v388, 126
          %v405 = vpop.permute.xlu0 %404
          %406 = vrot.lane.b32.xlu0 %v389, 126
          %v407 = vpop.permute.xlu0 %406
          %408 = vrot.lane.b32.xlu0 %v390, 126
          %v409 = vpop.permute.xlu0 %408
          %410 = vrot.lane.b32.xlu0 %v391, 126
          %v411 = vpop.permute.xlu0 %410
          %412 = vrot.lane.b32.xlu0 %v392, 126
          %v413 = vpop.permute.xlu0 %412
          %414 = vrot.lane.b32.xlu0 %v393, 126
          %v415 = vpop.permute.xlu0 %414
          %416 = vrot.lane.b32.xlu0 %v394, 126
          %v417 = vpop.permute.xlu0 %416
          %418 = vrot.lane.b32.xlu0 %v395, 126
          %v419 = vpop.permute.xlu0 %418
          %v428 = vmax.f32 %v388, %v405
          %v429 = vmax.f32 %v389, %v407
          %v430 = vmax.f32 %v390, %v409
          %v431 = vmax.f32 %v391, %v411
          %v432 = vmax.f32 %v392, %v413
          %v433 = vmax.f32 %v393, %v415
          %v434 = vmax.f32 %v394, %v417
          %v435 = vmax.f32 %v395, %v419
          %436 = vrot.lane.b32.xlu0 %v348, 124
          %v437 = vpop.permute.xlu0 %436
          %438 = vrot.lane.b32.xlu0 %v349, 124
          %v439 = vpop.permute.xlu0 %438
          %440 = vrot.lane.b32.xlu0 %v350, 124
          %v441 = vpop.permute.xlu0 %440
          %442 = vrot.lane.b32.xlu0 %v351, 124
          %v443 = vpop.permute.xlu0 %442
          %444 = vrot.lane.b32.xlu0 %v352, 124
          %v445 = vpop.permute.xlu0 %444
          %446 = vrot.lane.b32.xlu0 %v353, 124
          %v447 = vpop.permute.xlu0 %446
          %448 = vrot.lane.b32.xlu0 %v354, 124
          %v449 = vpop.permute.xlu0 %448
          %450 = vrot.lane.b32.xlu0 %v355, 124
          %v451 = vpop.permute.xlu0 %450
          %v460 = vmax.f32 %v428, %v437
          %v461 = vmax.f32 %v429, %v439
          %v462 = vmax.f32 %v430, %v441
          %v463 = vmax.f32 %v431, %v443
          %v464 = vmax.f32 %v432, %v445
          %v465 = vmax.f32 %v433, %v447
          %v466 = vmax.f32 %v434, %v449
          %v467 = vmax.f32 %v435, %v451
          %468 = vst.msk [vmem:[#allocation4] sm:$0xff] %vm226, %v460
          %469 = vst.msk [vmem:[#allocation4 + $0x8] sm:$0xff] %vm226, %v461
          %470 = vst.msk [vmem:[#allocation4 + $0x10] sm:$0xff] %vm226, %v462
          %471 = vst.msk [vmem:[#allocation4 + $0x18] sm:$0xff] %vm226, %v463
          %472 = vst.msk [vmem:[#allocation4 + $0x20] sm:$0xff] %vm226, %v464
          %473 = vst.msk [vmem:[#allocation4 + $0x28] sm:$0xff] %vm226, %v465
          %474 = vst.msk [vmem:[#allocation4 + $0x30] sm:$0xff] %vm226, %v466
          %475 = vst.msk [vmem:[#allocation4 + $0x38] sm:$0xff] %vm226, %v467
        $region36: #{tpu_custom_call.1} parent=23 // pred_fallthru
          _
        %v476 = vld [vmem:[#allocation4] sm:$0xff]
        %v477 = vld [vmem:[#allocation4 + $0x8] sm:$0xff]
        %v478 = vld [vmem:[#allocation4 + $0x10] sm:$0xff]
        %v479 = vld [vmem:[#allocation4 + $0x18] sm:$0xff]
        %v480 = vld [vmem:[#allocation4 + $0x20] sm:$0xff]
        %v481 = vld [vmem:[#allocation4 + $0x28] sm:$0xff]
        %v482 = vld [vmem:[#allocation4 + $0x30] sm:$0xff]
        %v483 = vld [vmem:[#allocation4 + $0x38] sm:$0xff]
        %vm484 = vcmask 130048
        %485 = vst.msk [vmem:[%s162] sm:$0xff] %vm484, %v476
        %486 = vst.msk [vmem:[%s162 + $0x8] sm:$0xff] %vm484, %v477
        %487 = vst.msk [vmem:[%s162 + $0x10] sm:$0xff] %vm484, %v478
        %488 = vst.msk [vmem:[%s162 + $0x18] sm:$0xff] %vm484, %v479
        %489 = vst.msk [vmem:[%s162 + $0x20] sm:$0xff] %vm484, %v480
        %490 = vst.msk [vmem:[%s162 + $0x28] sm:$0xff] %vm484, %v481
        %491 = vst.msk [vmem:[%s162 + $0x30] sm:$0xff] %vm484, %v482
        %492 = vst.msk [vmem:[%s162 + $0x38] sm:$0xff] %vm484, %v483
        %s493 = sand.u32 %s77, 1
        %s494 = scalar_lea.sflag [#allocation7], %s493
        %s495 = sand.u32 %s77, 1
        %s496 = smul.addr %s495, 64
        %s497 = scalar_lea.vmem [#allocation8], %s496
        // Predicated region
        $region37: #{tpu_custom_call.1} parent=23 // pred_check
          %p498 = pneg %p87
        $region38: #{tpu_custom_call.1} parent=23 // pred_check_branch
          %500 = sbr.rel (%p498) target = $region40
        $region39: #{tpu_custom_call.1} parent=23 // pred_region
          %s501 = sadd.s32 %s25, %s24
          %s502 = smul.u32 4, %s501
          %s504 = ssub.s32 1024, 1024
          %505 = vsyncadd %s494, %s504
          %s506 = smul.addr %s502, 2
          %s507 = smul.addr %s23, 32
          %s508 = sadd.s32 %s506, %s507
          %s509 = smul.addr %s508, 128
          %s510 = scalar_lea.hbm %s1, %s509
          %s511 = sshll.u32 %s497, 4
          %s512 = int_to_ptr.vmem [resolvable:$true] %s511
          %517 = dma.vmem_to_hbm [thread:$0]  %s512, 1024, %s510, %s494, 128, 128, 8
        $region40: #{tpu_custom_call.1} parent=23 // pred_fallthru
          _
      $region24: #{tpu_custom_call.1} parent=5 // pred_fallthru
        _
      %p518 = scmp.le.s32.totalorder 2, %s13
      // Predicated region
      $region41: #{tpu_custom_call.1} parent=5 // pred_check
        %p519 = pneg %p518
      $region42: #{tpu_custom_call.1} parent=5 // pred_check_branch
        %521 = sbr.rel (%p519) target = $region44
      $region43: #{tpu_custom_call.1} parent=5 // pred_region
        %s522 = ssub.s32 %s13, 2
        // Predicated region
        $region45: #{tpu_custom_call.1} parent=43 // pred_check
          %p523 = pneg %p93
        $region46: #{tpu_custom_call.1} parent=43 // pred_check_branch
          %525 = sbr.rel (%p523) target = $region48
        $region47: #{tpu_custom_call.1} parent=43 // pred_region
          %s526 = sand.u32 %s78, 1
          %s527 = scalar_lea.sflag [#allocation7], %s526
          %s528 = sand.u32 %s78, 1
          %s529 = smul.addr %s528, 64
          %s530 = scalar_lea.vmem [#allocation8], %s529
          %531 = dma.done %s527, 1024
        $region48: #{tpu_custom_call.1} parent=43 // pred_fallthru
          _
      $region44: #{tpu_custom_call.1} parent=5 // pred_fallthru
        _
    $region6: #{tpu_custom_call.1} parent=1 // loop_footer
      %s17 = sadd.s32 1, %s13
    $region7: #{tpu_custom_call.1} parent=1 // loop_footer_branch
      %12 = sbr.rel target = $region3
    $region8: #{tpu_custom_call.1} parent=1 // loop_exit
      _
    %532 = vsyncpa [#allocation6], 1
    %s533 = scalar_lea.sflag [#allocation6], 1
    %534 = vsyncpa %s533, 1
    %535 = vsyncpa [#allocation7], 1
    %s536 = scalar_lea.sflag [#allocation7], 1
    %537 = vsyncpa %s536, 1

</llo_original>
